<compile_context>
chip_gen: v7x
topology: tpu7x:2x2x1
jax: 0.10.0
libtpu: 0.0.40
codegen_flags: <defaults>
</compile_context>

<pallas_src>
import functools

import jax
import jax.numpy as jnp
from jax.experimental import pallas as pl
from jax.experimental.pallas import tpu as pltpu

GROUP_SIZE = 128


def _round_up(x, m):
    return ((x + m - 1) // m) * m


# ---------------------------------------------------------------------------
# Init-time weight / scale preparation (mirrors the torch module __init__).
# ---------------------------------------------------------------------------
def prepare_double_binary_weights(s0, bp1, s2, bp3, s4):
    """+/-1 weights -> int8 in (in, out) layout (exact, half the HBM bytes of
    bf16); per-feature scales -> separate f32 row vectors applied in-kernel."""
    b1 = bp1.T.astype(jnp.int8)                    # (Din,  Dmid), +/-1
    b3 = bp3.T.astype(jnp.int8)                    # (Dmid, Dout), +/-1
    s0 = s0.astype(jnp.float32).reshape(1, -1)     # (1, Din)
    s2 = s2.astype(jnp.float32).reshape(1, -1)     # (1, Dmid)
    s4 = s4.astype(jnp.float32).reshape(1, -1)     # (1, Dout)
    return s0, b1, s2, b3, s4


# ---------------------------------------------------------------------------
# Kernel body.  Grid = (Dout tiles j, row tiles i, Dmid chunks k).
# ---------------------------------------------------------------------------
def _double_binary_kernel(x_ref, s0_ref, b1_ref, s2_ref, b3_ref, s4_ref,
                          o_ref, acc_ref):
    k = pl.program_id(2)

    @pl.when(k == 0)
    def _():
        acc_ref[...] = jnp.zeros_like(acc_ref)

    # x * s0 (per-Din scale), bf16 for the MXU.  +/-1 weights exact in bf16.
    xs = (x_ref[...].astype(jnp.float32) * s0_ref[...]).astype(jnp.bfloat16)
    w1 = b1_ref[...].astype(jnp.bfloat16)                       # (Din, bk)
    h = jnp.dot(xs, w1, preferred_element_type=jnp.float32)     # (tn, bk) f32
    h = (h * s2_ref[...]).astype(jnp.bfloat16)                  # per-chunk s2
    w3 = b3_ref[...].astype(jnp.bfloat16)                       # (bk, bdo)
    acc_ref[...] += jnp.dot(h, w3, preferred_element_type=jnp.float32)

    @pl.when(k == pl.num_programs(2) - 1)
    def _():
        o_ref[...] = (acc_ref[...] * s4_ref[...]).astype(o_ref.dtype)


# ---------------------------------------------------------------------------
# Capability probes / budgets.
# ---------------------------------------------------------------------------
@functools.cache
def _buffered_one_supported():
    """Probe once whether pipeline_mode=pl.Buffered(1) (single-buffered
    grid-invariant operands) is supported by this jax/libtpu build."""
    try:
        def _k(x_ref, o_ref):
            o_ref[...] = x_ref[...]

        probe = pl.pallas_call(
            _k,
            out_shape=jax.ShapeDtypeStruct((8, 128), jnp.float32),
            grid=(1,),
            in_specs=[pl.BlockSpec((8, 128), lambda i: (0, 0),
                                   pipeline_mode=pl.Buffered(1))],
            out_specs=pl.BlockSpec((8, 128), lambda i: (0, 0)),
        )(jnp.zeros((8, 128), jnp.float32))
        jax.block_until_ready(probe)
        return True
    except Exception:
        return False


@functools.cache
def _vmem_budget_bytes():
    """~85% of physical per-core VMEM (54 MiB on v7x, ~109 MiB on v5e/v6e)."""
    try:
        cap = int(pltpu.get_tpu_info().vmem_capacity_bytes)
    except Exception:
        cap = 64 * 1024 * 1024          # conservative fallback (v7x-sized)
    return int(0.85 * cap)


def _vmem_estimate(tn, Din, Dmid, Dout, bk, bdo, x_bytes, w_bytes, out_bytes):
    est = 2 * tn * Din * x_bytes            # x tile (double-buffered)
    est += 2 * Din * bk * w_bytes           # b1 tile
    est += 2 * bk * bdo * w_bytes           # b3 tile
    est += 2 * tn * bdo * out_bytes         # out tile
    est += 4 * tn * bdo                     # f32 accumulator scratch
    est += 4 * tn * (Din + bk + bdo)        # xs / h temporaries
    est += 2 * 4 * (Din + Dmid + Dout)      # scale vectors
    return est


def _weight_candidates(dim):
    return [d for d in range(dim, 127, -128) if dim % d == 0]


def _choose_tiles(N, Din, Dmid, Dout, block_n, x_bytes, w_bytes, out_bytes,
                  budget):
    cand_k = _weight_candidates(Dmid)
    cand_do = _weight_candidates(Dout)
    tn = min(block_n, _round_up(N, 16))
    ki = di = 0

    def est():
        return _vmem_estimate(tn, Din, Dmid, Dout, cand_k[ki], cand_do[di],
                              x_bytes, w_bytes, out_bytes)

    while est() > budget:
        if ki + 1 < len(cand_k) and cand_k[ki] > 512:
            ki += 1                                    # chunk Dmid first
        elif di + 1 < len(cand_do):
            di += 1                                    # then tile Dout
        elif ki + 1 < len(cand_k):
            ki += 1                                    # then chunk Dmid harder
        elif tn > 16:
            tn = max(16, _round_up(tn // 2, 16))       # finally shrink rows
        else:
            break
    return tn, cand_k[ki], cand_do[di]


# ---------------------------------------------------------------------------
# Wrapper.
# ---------------------------------------------------------------------------
def double_binary_linear(x, s0, b1, s2, b3, s4, *,
                         block_n=None, block_k=None, block_dout=None):
    """x: (..., Din). s0/s2/s4: (1, D*) f32. b1: (Din, Dmid) int8 +/-1,
    b3: (Dmid, Dout) int8 +/-1 (from prepare_double_binary_weights)."""
    Din, Dmid = b1.shape
    Dmid2, Dout = b3.shape
    assert Dmid == Dmid2
    assert s0.shape[-1] == Din and s2.shape[-1] == Dmid and s4.shape[-1] == Dout
    assert Din % GROUP_SIZE == 0 and Dmid % GROUP_SIZE == 0 and Dout % GROUP_SIZE == 0

    # fp16 has no native TPU path: compute in bf16 with f32 MXU accumulation.
    if x.dtype != jnp.bfloat16:
        x = x.astype(jnp.bfloat16)
    out_dtype = x.dtype

    lead = x.shape[:-1]
    N = 1
    for d in lead:
        N *= d
    x2 = x.reshape(N, Din)

    budget = _vmem_budget_bytes()
    if block_n is None:
        block_n = 512 if budget >= 96 * 1024 * 1024 else 256
    assert block_n % 16 == 0            # bf16 packs 16 rows per sublane group

    w_bytes = b1.dtype.itemsize
    tn, bk, bdo = _choose_tiles(N, Din, Dmid, Dout, block_n,
                                x2.dtype.itemsize, w_bytes, 2, budget)
    if block_k is not None:
        assert Dmid % block_k == 0 and block_k % 128 == 0
        bk = block_k
    if block_dout is not None:
        assert Dout % block_dout == 0 and block_dout % 128 == 0
        bdo = block_dout

    N_pad = _round_up(N, tn)
    if N_pad != N:
        x2 = jnp.pad(x2, ((0, N_pad - N), (0, 0)))

    n_rows = N_pad // tn
    n_dout = Dout // bdo
    n_k = Dmid // bk

    # v7x megacore: give decode-size batches >=2 parallel grid points.  Only
    # when weights are fully resident (n_k == 1) so single-TC chips pay no
    # extra weight traffic.
    if (block_dout is None and n_rows == 1 and n_dout == 1 and n_k == 1
            and Dout % 256 == 0):
        bdo = Dout // 2
        n_dout = 2

    est = _vmem_estimate(tn, Din, Dmid, Dout, bk, bdo,
                         x2.dtype.itemsize, w_bytes, 2)
    vmem_limit = min(budget, max(2 * est, 32 * 1024 * 1024))

    single_buffer = _buffered_one_supported()
    b1_kw = (dict(pipeline_mode=pl.Buffered(1))
             if (single_buffer and n_k == 1) else {})
    b3_kw = (dict(pipeline_mode=pl.Buffered(1))
             if (single_buffer and n_k == 1 and n_dout == 1) else {})

    grid = (n_dout, n_rows, n_k)        # rows inner vs Dout, reduction last

    in_specs = [
        pl.BlockSpec((tn, Din), lambda j, i, k: (i, 0)),
        pl.BlockSpec((1, Din), lambda j, i, k: (0, 0)),
        pl.BlockSpec((Din, bk), lambda j, i, k: (0, k), **b1_kw),
        pl.BlockSpec((1, bk), lambda j, i, k: (0, k)),
        pl.BlockSpec((bk, bdo), lambda j, i, k: (k, j), **b3_kw),
        pl.BlockSpec((1, bdo), lambda j, i, k: (0, j)),
    ]
    out_specs = pl.BlockSpec((tn, bdo), lambda j, i, k: (i, j))

    flops = 2 * N_pad * (Din * Dmid + Dmid * Dout)
    bytes_accessed = (x2.size * x2.dtype.itemsize
                      + b1.size * b1.dtype.itemsize
                      + b3.size * b3.dtype.itemsize
                      + 4 * (Din + Dmid + Dout)
                      + N_pad * Dout * 2)
    cost = pl.CostEstimate(flops=int(flops), transcendentals=0,
                           bytes_accessed=int(bytes_accessed))

    out = pl.pallas_call(
        _double_binary_kernel,
        out_shape=jax.ShapeDtypeStruct((N_pad, Dout), out_dtype),
        grid=grid,
        in_specs=in_specs,
        out_specs=out_specs,
        scratch_shapes=[pltpu.VMEM((tn, bdo), jnp.float32)],
        compiler_params=pltpu.CompilerParams(
            dimension_semantics=("parallel", "parallel", "arbitrary"),
            vmem_limit_bytes=int(vmem_limit),
        ),
        cost_estimate=cost,
    )(x2, s0, b1, s2, b3, s4)

    if N_pad != N:
        out = out[:N]
    return out.reshape(*lead, Dout)


def double_binary_linear_ref(x, s0, bp1, s2, bp3, s4):
    """Module-order reference (x*s0 @ bp1.T * s2 @ bp3.T * s4) in f32."""
    xf = x.astype(jnp.float32) * s0.astype(jnp.float32)
    h = xf @ bp1.T.astype(jnp.float32)
    h = h * s2.astype(jnp.float32)
    y = h @ bp3.T.astype(jnp.float32)
    return y * s4.astype(jnp.float32)


if __name__ == "__main__":
    # Small shapes consistent with the module; dims multiples of 256 so MXU
    # passes are full on v6e/v7x and pad_to_multiple is a no-op.
    B, S = 2, 8
    dim_in, dim_middle, dim_out = 256, 512, 256

    key = jax.random.PRNGKey(0)
    k_x, k_w0, k_b1, k_w2, k_b3, k_w4, k_x2 = jax.random.split(key, 7)

    x = jax.random.normal(k_x, (B, S, dim_in), jnp.float32).astype(jnp.bfloat16)

    # scaling vectors (torch fp16 parameters)
    w0 = (0.5 + 0.1 * jax.random.normal(k_w0, (dim_in,))).astype(jnp.bfloat16)
    w2 = (0.5 + 0.1 * jax.random.normal(k_w2, (dim_middle,))).astype(jnp.bfloat16)
    w4 = (0.5 + 0.1 * jax.random.normal(k_w4, (dim_out,))).astype(jnp.bfloat16)

    # binary (+/-1) weight matrices, as produced by my_unpack(...)*2-1
    bp1 = (2 * jax.random.bernoulli(k_b1, 0.5, (dim_middle, dim_in)).astype(jnp.int8) - 1)
    bp3 = (2 * jax.random.bernoulli(k_b3, 0.5, (dim_out, dim_middle)).astype(jnp.int8) - 1)

    # One-time weight prep (module init in production).
    s0, b1, s2, b3, s4 = prepare_double_binary_weights(w0, bp1, w2, bp3, w4)
    s0, b1, s2, b3, s4 = jax.block_until_ready((s0, b1, s2, b3, s4))

    # ---- test 1: (B, S, Din) decode-sized input, automatic tiling ----
    out = double_binary_linear(x, s0, b1, s2, b3, s4)
    out = jax.block_until_ready(out)
    assert out.shape == (B, S, dim_out) and out.dtype == jnp.bfloat16

    ref = double_binary_linear_ref(x.reshape(-1, dim_in), w0, bp1, w2, bp3, w4)
    ref = ref.reshape(B, S, dim_out)
    err = float(jnp.max(jnp.abs(out.astype(jnp.float32) - ref)))
    scale = float(jnp.max(jnp.abs(ref))) + 1e-6
    assert err / scale < 2e-2, f"mismatch vs reference: rel={err / scale}"

    # ---- test 2: ragged N (not multiple of tile or 16), f32 input, and
    #      explicit Dmid-reduction + Dout tiling to exercise the accumulator --
    N2 = 601
    x2 = jax.random.normal(k_x2, (N2, dim_in), jnp.float32)
    out2 = double_binary_linear(x2, s0, b1, s2, b3, s4,
                                block_n=256, block_k=128, block_dout=128)
    out2 = jax.block_until_ready(out2)
    assert out2.shape == (N2, dim_out) and out2.dtype == jnp.bfloat16

    ref2 = double_binary_linear_ref(x2.astype(jnp.bfloat16), w0, bp1, w2, bp3, w4)
    err2 = float(jnp.max(jnp.abs(out2.astype(jnp.float32) - ref2)))
    scale2 = float(jnp.max(jnp.abs(ref2))) + 1e-6
    assert err2 / scale2 < 2e-2, f"mismatch vs reference: rel={err2 / scale2}"

    print("KERNEL_OK")
</pallas_src>

<mosaic_0001>
module attributes {stable_mosaic.version = 11 : i64} {
  func.func @_k(%arg0: i32, %arg1: memref<8x128xf32, #tpu.memory_space<vmem>>, %arg2: memref<8x128xf32, #tpu.memory_space<vmem>>) attributes {dimension_semantics = [#tpu.dimension_semantics<arbitrary>], iteration_bounds = array<i64: 1>, scalar_prefetch = 0 : i64, scratch_operands = 0 : i64, tpu.core_type = #tpu.core_type<tc>, window_params = [{pipeline_mode = #tpu.pipeline_mode<synchronous>, transform_indices = @transform_0, window_bounds = array<i64: 8, 128>}, {pipeline_mode = #tpu.pipeline_mode<synchronous>, transform_indices = @transform_1, window_bounds = array<i64: 8, 128>}]} {
    %c0 = arith.constant 0 : index
    %c0_0 = arith.constant 0 : index
    %0 = vector.load %arg1[%c0, %c0_0] : memref<8x128xf32, #tpu.memory_space<vmem>>, vector<8x128xf32>
    %c0_1 = arith.constant 0 : index
    %c0_2 = arith.constant 0 : index
    %1 = vector.load %arg2[%c0_1, %c0_2] : memref<8x128xf32, #tpu.memory_space<vmem>>, vector<8x128xf32>
    tpu.vector_store %arg2[%c0_1, %c0_2], %0 {strides = array<i32>} : memref<8x128xf32, #tpu.memory_space<vmem>>, vector<8x128xf32>,
    return
  }
  func.func @transform_0(%arg0: i32) -> (i32, i32) {
    %c0_i32 = arith.constant 0 : i32
    %c0_i32_0 = arith.constant 0 : i32
    %c0_i32_1 = arith.constant 0 : i32
    return %c0_i32, %c0_i32_0 : i32, i32
  }
  func.func @transform_1(%arg0: i32) -> (i32, i32) {
    %c0_i32 = arith.constant 0 : i32
    %c0_i32_0 = arith.constant 0 : i32
    %c0_i32_1 = arith.constant 0 : i32
    return %c0_i32, %c0_i32_0 : i32, i32
  }
}

module attributes {stable_mosaic.version = 11 : i64} {
  func.func @_double_binary_kernel(%arg0: i32, %arg1: i32, %arg2: i32, %arg3: memref<16x256xbf16, #tpu.memory_space<vmem>>, %arg4: memref<1x256xf32, #tpu.memory_space<vmem>>, %arg5: memref<256x512xi8, #tpu.memory_space<vmem>>, %arg6: memref<1x512xf32, #tpu.memory_space<vmem>>, %arg7: memref<512x128xi8, #tpu.memory_space<vmem>>, %arg8: memref<1x128xf32, #tpu.memory_space<vmem>>, %arg9: memref<16x128xbf16, #tpu.memory_space<vmem>>, %arg10: memref<16x128xf32, #tpu.memory_space<vmem>>) attributes {dimension_semantics = [#tpu.dimension_semantics<parallel>, #tpu.dimension_semantics<parallel>, #tpu.dimension_semantics<arbitrary>], iteration_bounds = array<i64: 2, 1, 1>, scalar_prefetch = 0 : i64, scratch_operands = 1 : i64, tpu.core_type = #tpu.core_type<tc>, window_params = [{transform_indices = @transform_0, window_bounds = array<i64: 16, 256>}, {pipeline_mode = #tpu.pipeline_mode<synchronous>, transform_indices = @transform_1, window_bounds = array<i64: 1, 256>}, {transform_indices = @transform_2, window_bounds = array<i64: 256, 512>}, {transform_indices = @transform_3, window_bounds = array<i64: 1, 512>}, {transform_indices = @transform_4, window_bounds = array<i64: 512, 128>}, {transform_indices = @transform_5, window_bounds = array<i64: 1, 128>}, {transform_indices = @transform_6, window_bounds = array<i64: 16, 128>}]} {
    %c0_i32 = arith.constant 0 : i32
    %0 = arith.cmpi eq, %arg2, %c0_i32 : i32
    %1 = arith.extui %0 : i1 to i32
    %c0_i32_0 = arith.constant 0 : i32
    %2 = arith.cmpi ne, %1, %c0_i32_0 : i32
    scf.if %2 {
      %cst_17 = arith.constant 0.000000e+00 : f32
      %25 = vector.broadcast %cst_17 : f32 to vector<16x128xf32>
      %c0_18 = arith.constant 0 : index
      %c0_19 = arith.constant 0 : index
      %26 = vector.load %arg10[%c0_18, %c0_19] : memref<16x128xf32, #tpu.memory_space<vmem>>, vector<16x128xf32>
      tpu.vector_store %arg10[%c0_18, %c0_19], %25 {strides = array<i32>} : memref<16x128xf32, #tpu.memory_space<vmem>>, vector<16x128xf32>,
    } else {
    }
    %c0 = arith.constant 0 : index
    %c0_1 = arith.constant 0 : index
    %3 = vector.load %arg3[%c0, %c0_1] : memref<16x256xbf16, #tpu.memory_space<vmem>>, vector<16x256xbf16>
    %4 = arith.extf %3 : vector<16x256xbf16> to vector<16x256xf32>
    %c0_2 = arith.constant 0 : index
    %c0_3 = arith.constant 0 : index
    %5 = vector.load %arg4[%c0_2, %c0_3] : memref<1x256xf32, #tpu.memory_space<vmem>>, vector<1x256xf32>
    %6 = vector.broadcast %5 : vector<1x256xf32> to vector<16x256xf32>
    %7 = arith.mulf %4, %6 : vector<16x256xf32>
    %8 = arith.truncf %7 : vector<16x256xf32> to vector<16x256xbf16>
    %c0_4 = arith.constant 0 : index
    %c0_5 = arith.constant 0 : index
    %9 = vector.load %arg5[%c0_4, %c0_5] : memref<256x512xi8, #tpu.memory_space<vmem>>, vector<256x512xi8>
    %10 = arith.sitofp %9 : vector<256x512xi8> to vector<256x512xbf16>
    %cst = arith.constant dense<0.000000e+00> : vector<16x512xf32>
    %11 = tpu.matmul %8, %10, %cst {dimension_numbers = #tpu.dot_dimension_numbers<[1], [0], [0], [1], [0, 0, 1, 1], [], []>} : vector<16x256xbf16>, vector<256x512xbf16>, vector<16x512xf32> -> vector<16x512xf32>
    %c0_6 = arith.constant 0 : index
    %c0_7 = arith.constant 0 : index
    %12 = vector.load %arg6[%c0_6, %c0_7] : memref<1x512xf32, #tpu.memory_space<vmem>>, vector<1x512xf32>
    %13 = vector.broadcast %12 : vector<1x512xf32> to vector<16x512xf32>
    %14 = arith.mulf %11, %13 : vector<16x512xf32>
    %15 = arith.truncf %14 : vector<16x512xf32> to vector<16x512xbf16>
    %c0_8 = arith.constant 0 : index
    %c0_9 = arith.constant 0 : index
    %16 = vector.load %arg7[%c0_8, %c0_9] : memref<512x128xi8, #tpu.memory_space<vmem>>, vector<512x128xi8>
    %17 = arith.sitofp %16 : vector<512x128xi8> to vector<512x128xbf16>
    %c0_10 = arith.constant 0 : index
    %c0_11 = arith.constant 0 : index
    %18 = vector.load %arg10[%c0_10, %c0_11] : memref<16x128xf32, #tpu.memory_space<vmem>>, vector<16x128xf32>
    %cst_12 = arith.constant dense<0.000000e+00> : vector<16x128xf32>
    %19 = tpu.matmul %15, %17, %cst_12 {dimension_numbers = #tpu.dot_dimension_numbers<[1], [0], [0], [1], [0, 0, 1, 1], [], []>} : vector<16x512xbf16>, vector<512x128xbf16>, vector<16x128xf32> -> vector<16x128xf32>
    %20 = arith.addf %18, %19 : vector<16x128xf32>
    %c0_13 = arith.constant 0 : index
    %c0_14 = arith.constant 0 : index
    %21 = vector.load %arg10[%c0_13, %c0_14] : memref<16x128xf32, #tpu.memory_space<vmem>>, vector<16x128xf32>
    tpu.vector_store %arg10[%c0_13, %c0_14], %20 {strides = array<i32>} : memref<16x128xf32, #tpu.memory_space<vmem>>, vector<16x128xf32>,
    %c0_i32_15 = arith.constant 0 : i32
    %22 = arith.cmpi eq, %arg2, %c0_i32_15 : i32
    %23 = arith.extui %22 : i1 to i32
    %c0_i32_16 = arith.constant 0 : i32
    %24 = arith.cmpi ne, %23, %c0_i32_16 : i32
    scf.if %24 {
      %c0_17 = arith.constant 0 : index
      %c0_18 = arith.constant 0 : index
      %25 = vector.load %arg10[%c0_17, %c0_18] : memref<16x128xf32, #tpu.memory_space<vmem>>, vector<16x128xf32>
      %c0_19 = arith.constant 0 : index
      %c0_20 = arith.constant 0 : index
      %26 = vector.load %arg8[%c0_19, %c0_20] : memref<1x128xf32, #tpu.memory_space<vmem>>, vector<1x128xf32>
      %27 = vector.broadcast %26 : vector<1x128xf32> to vector<16x128xf32>
      %28 = arith.mulf %25, %27 : vector<16x128xf32>
      %29 = arith.truncf %28 : vector<16x128xf32> to vector<16x128xbf16>
      %c0_21 = arith.constant 0 : index
      %c0_22 = arith.constant 0 : index
      %30 = vector.load %arg9[%c0_21, %c0_22] : memref<16x128xbf16, #tpu.memory_space<vmem>>, vector<16x128xbf16>
      tpu.vector_store %arg9[%c0_21, %c0_22], %29 {strides = array<i32>} : memref<16x128xbf16, #tpu.memory_space<vmem>>, vector<16x128xbf16>,
    } else {
    }
    return
  }
  func.func @transform_0(%arg0: i32, %arg1: i32, %arg2: i32) -> (i32, i32) {
    %c0_i32 = arith.constant 0 : i32
    %c0_i32_0 = arith.constant 0 : i32
    return %arg1, %c0_i32 : i32, i32
  }
  func.func @transform_1(%arg0: i32, %arg1: i32, %arg2: i32) -> (i32, i32) {
    %c0_i32 = arith.constant 0 : i32
    %c0_i32_0 = arith.constant 0 : i32
    %c0_i32_1 = arith.constant 0 : i32
    return %c0_i32, %c0_i32_0 : i32, i32
  }
  func.func @transform_2(%arg0: i32, %arg1: i32, %arg2: i32) -> (i32, i32) {
    %c0_i32 = arith.constant 0 : i32
    %c0_i32_0 = arith.constant 0 : i32
    return %c0_i32, %arg2 : i32, i32
  }
  func.func @transform_3(%arg0: i32, %arg1: i32, %arg2: i32) -> (i32, i32) {
    %c0_i32 = arith.constant 0 : i32
    %c0_i32_0 = arith.constant 0 : i32
    return %c0_i32, %arg2 : i32, i32
  }
  func.func @transform_4(%arg0: i32, %arg1: i32, %arg2: i32) -> (i32, i32) {
    %c0_i32 = arith.constant 0 : i32
    return %arg2, %arg0 : i32, i32
  }
  func.func @transform_5(%arg0: i32, %arg1: i32, %arg2: i32) -> (i32, i32) {
    %c0_i32 = arith.constant 0 : i32
    %c0_i32_0 = arith.constant 0 : i32
    return %c0_i32, %arg0 : i32, i32
  }
  func.func @transform_6(%arg0: i32, %arg1: i32, %arg2: i32) -> (i32, i32) {
    %c0_i32 = arith.constant 0 : i32
    return %arg1, %arg0 : i32, i32
  }
}

</mosaic_0001>

<llo_original>
// kernel: tpu_custom_call.1
$region0: #{tpu_custom_call.1}
  #allocation0 [shape = 'u32[]', space=smem, size = 0x4, offset = 0x4, fixed_abs, tag = 'smem constant byte address 0x4 - core index']
  #allocation1 [shape = 'u32[144,128]{1,0:T(1,128)}', space=vmem, size = 0x12000, scoped, tag = 'internal scratch']
  %s0 = inlined_call_operand.hbm [shape: f32[8,128], index: 0, kind: input, shape index: {}]
  %s1 = inlined_call_operand.hbm [shape: f32[8,128], index: 1, kind: output, shape index: {}]
  %s2 = sld [smem:[#allocation0]]
  $region18: #{tpu_custom_call.1} parent=0
    _
  %s4 = ssub.s32 1, %s2
  %s5 = scalar_select 0, %s4, %s2
  $region1: #{tpu_custom_call.1} parent=0
    #allocation2 [shape = 'u8[4096]{0}', space=vmem, size = 0x1000, scoped, tag = 'input window, operand 0, single buffered']
    #allocation3 [shape = 's32[1]{0}', space=sflag, size = 0x4, scoped, tag = 'scoped memory for tpu_custom_call.1']
    #allocation4 [shape = 's32[1]{0}', space=sflag, size = 0x4, scoped, tag = 'scoped memory for tpu_custom_call.1']
    #allocation5 [shape = 'u8[4096]{0}', space=vmem, size = 0x1000, scoped, tag = 'output window, operand 0, single buffered']
    %6 = vsyncpa [#allocation3], 0
    %7 = vsyncpa [#allocation4], 0
    // Predicated region
    $region2: #{tpu_custom_call.1} parent=1 // pred_check
      _
    $region3: #{tpu_custom_call.1} parent=1 // pred_check_branch
      %9 = sbr.rel (0) target = $region5
    $region4: #{tpu_custom_call.1} parent=1 // pred_region
      %s11 = ssub.s32 128, 128
      %12 = vsyncadd [#allocation3], %s11
      %s14 = sshll.u32 [#allocation2], 4
      %s15 = int_to_ptr.vmem [resolvable:$true] %s14
      %17 = dma.hbm_to_vmem [thread:$0]  %s0, 128, %s15, [#allocation3]
    $region5: #{tpu_custom_call.1} parent=1 // pred_fallthru
      _
    // Predicated region
    $region6: #{tpu_custom_call.1} parent=1 // pred_check
      _
    $region7: #{tpu_custom_call.1} parent=1 // pred_check_branch
      %19 = sbr.rel (0) target = $region9
    $region8: #{tpu_custom_call.1} parent=1 // pred_region
      %20 = dma.done [#allocation3], 128
    $region9: #{tpu_custom_call.1} parent=1 // pred_fallthru
      _
    %v21 = vld [vmem:[#allocation2] sm:$0xff]
    %22 = vst [vmem:[#allocation5] sm:$0xff] %v21
    // Predicated region
    $region10: #{tpu_custom_call.1} parent=1 // pred_check
      _
    $region11: #{tpu_custom_call.1} parent=1 // pred_check_branch
      %24 = sbr.rel (0) target = $region13
    $region12: #{tpu_custom_call.1} parent=1 // pred_region
      %s26 = ssub.s32 128, 128
      %27 = vsyncadd [#allocation4], %s26
      %s29 = sshll.u32 [#allocation5], 4
      %s30 = int_to_ptr.vmem [resolvable:$true] %s29
      %32 = dma.vmem_to_hbm [thread:$0]  %s30, 128, %s1, [#allocation4]
    $region13: #{tpu_custom_call.1} parent=1 // pred_fallthru
      _
    // Predicated region
    $region14: #{tpu_custom_call.1} parent=1 // pred_check
      _
    $region15: #{tpu_custom_call.1} parent=1 // pred_check_branch
      %34 = sbr.rel (0) target = $region17
    $region16: #{tpu_custom_call.1} parent=1 // pred_region
      %35 = dma.done [#allocation4], 128
    $region17: #{tpu_custom_call.1} parent=1 // pred_fallthru
      _
    %36 = vsyncpa [#allocation3], 1
    %37 = vsyncpa [#allocation4], 1

// kernel: tpu_custom_call.1
$region0: #{tpu_custom_call.1}
  #allocation0 [shape = 'u32[]', space=smem, size = 0x4, offset = 0x4, fixed_abs, tag = 'smem constant byte address 0x4 - core index']
  #allocation1 [shape = 'u32[144,128]{1,0:T(1,128)}', space=vmem, size = 0x12000, scoped, tag = 'internal scratch']
  #allocation2 [shape = 'f32[16,128]{1,0:T(8,128)}', space=vmem, size = 0x2000, scoped, tag = 'scratch operand']
  %s0 = inlined_call_operand.hbm [shape: bf16[16,256], index: 0, kind: input, shape index: {}]
  %s1 = inlined_call_operand.vmem [shape: f32[1,256], index: 1, kind: input, shape index: {}]
  %s2 = inlined_call_operand.hbm [shape: s8[256,512], index: 2, kind: input, shape index: {}]
  %s3 = inlined_call_operand.vmem [shape: f32[1,512], index: 3, kind: input, shape index: {}]
  %s4 = inlined_call_operand.hbm [shape: s8[512,256], index: 4, kind: input, shape index: {}]
  %s5 = inlined_call_operand.vmem [shape: f32[1,256], index: 5, kind: input, shape index: {}]
  %s6 = inlined_call_operand.hbm [shape: bf16[16,256], index: 6, kind: output, shape index: {}]
  %s7 = sld [smem:[#allocation0]]
  $region77: #{tpu_custom_call.1} parent=0
    _
  %s9 = ssub.s32 1, %s7
  %s10 = scalar_select 0, %s9, %s7
  $region1: #{tpu_custom_call.1} parent=0
    #allocation3 [shape = 'u8[8192]{0}', space=vmem, size = 0x2000, scoped, tag = 'input window, operand 0, single buffered']
    #allocation4 [shape = 's32[2]{0}', space=sflag, size = 0x8, scoped, tag = 'scoped memory for tpu_custom_call.1']
    #allocation5 [shape = 's32[2]{0}', space=sflag, size = 0x8, scoped, tag = 'scoped memory for tpu_custom_call.1']
    #allocation6 [shape = 'u8[131072]{0}', space=vmem, size = 0x20000, scoped, tag = 'input window, operand 2, single buffered']
    #allocation7 [shape = 's32[1]{0}', space=sflag, size = 0x4, scoped, tag = 'scoped memory for tpu_custom_call.1']
    #allocation8 [shape = 'u8[131072]{0}', space=vmem, size = 0x20000, scoped, tag = 'input window, operand 4']
    #allocation9 [shape = 'u8[8192]{0}', space=vmem, size = 0x2000, scoped, tag = 'output window, operand 0']
    %11 = vsyncpa [#allocation4], 0
    %12 = vsyncpa [#allocation7], 0
    %13 = vsyncpa [#allocation5], 0
    %s14 = scalar_lea.sflag [#allocation5], 1
    %15 = vsyncpa %s14, 0
    loop: start=0, step=1, limit=4
    $region2: #{tpu_custom_call.1} parent=1 // loop_pre_header
      _
    $region3: #{tpu_custom_call.1} parent=1 // loop_header
      %s17 = sphi 0, %s21
      %p18 = scmp.ge.s32.totalorder %s17, 4
      %s24 = sphi 0, %s43
      %s25 = sphi 0, %s39
      %s26 = sphi 0, %s35
      %s27 = sphi 0, %s24
      %s28 = sphi 0, %s25
      %s29 = sphi 0, %s26
      %s30 = sphi 0, %s27
      %s31 = sphi 0, %s28
      %s32 = sphi 0, %s29
      %s46 = sphi 0, %s48
      %s49 = sphi 0, %s46
      %s50 = sphi 0, %s49
      %s66 = sphi 0, %s50
      %s70 = sphi 0, %s70
      %s72 = sphi 0, %s70
      %s73 = sphi 0, %s72
      %s87 = sphi 0, %s73
      %s93 = sphi 0, %s95
      %s96 = sphi 0, %s93
      %s97 = sphi 0, %s96
      %s113 = sphi 0, %s97
      %s119 = sphi 0, %s121
      %s122 = sphi 0, %s119
      %s123 = sphi 0, %s122
      %s139 = sphi 0, %s123
      %s147 = sphi 0, %s149
      %s150 = sphi 0, %s147
      %s151 = sphi 0, %s150
      %s167 = sphi 0, %s151
      %s173 = sphi 0, %s175
      %s176 = sphi 0, %s173
      %s177 = sphi 0, %s176
      %s193 = sphi 0, %s177
      %s201 = sphi 0, %s203
      %s204 = sphi 0, %s201
      %s205 = sphi 0, %s204
      %s221 = sphi 0, %s205
    $region4: #{tpu_custom_call.1} parent=1 // loop_header_branch
      %20 = sbr.rel (%p18) target = $region8
    $region5: #{tpu_custom_call.1} parent=1 // loop_body
      %s22 = ssub.s32 %s17, 1
      %s23 = ssub.s32 %s17, 2
      %s33 = sadd.s32 1, %s26
      %p34 = scmp.ge.s32.totalorder %s33, 1
      %s35 = scalar_select %p34, 0, %s33
      %s36 = sadd.s32 1, %s25
      %s37 = scalar_select %p34, %s36, %s25
      %p38 = scmp.ge.s32.totalorder %s37, 1
      %s39 = scalar_select %p38, 0, %s37
      %s40 = sadd.s32 1, %s24
      %s41 = scalar_select %p38, %s40, %s24
      %p42 = scmp.ge.s32.totalorder %s41, 2
      %s43 = scalar_select %p42, 0, %s41
      %s44 = ssub.s32 %s25, %s39
      %p45 = scmp.eq.s32.totalorder %s44, 0
      %s47 = sadd.s32 %s46, 1
      %s48 = scalar_select %p45, %s46, %s47
      %p51 = pneg %p45
      %p52 = scmp.eq.s32.totalorder %s17, 1
      %p53 = por %p51, %p52
      %p54 = scmp.ne.s32.totalorder %s46, %s49
      %p55 = scmp.eq.s32.totalorder %s17, 0
      %p56 = por %p54, %p55
      %p57 = scmp.ne.s32.totalorder %s46, %s49
      %p58 = scmp.eq.s32.totalorder %s22, 1
      %p59 = por %p57, %p58
      %p60 = scmp.ne.s32.totalorder %s49, %s50
      %p61 = scmp.eq.s32.totalorder %s22, 0
      %p62 = por %p60, %p61
      %p63 = scmp.ne.s32.totalorder %s49, %s50
      %p64 = scmp.eq.s32.totalorder %s23, 1
      %p65 = por %p63, %p64
      %p67 = scmp.ne.s32.totalorder %s50, %s66
      %p68 = scmp.eq.s32.totalorder %s23, 0
      %p69 = por %p67, %p68
      %s71 = sadd.s32 %s70, 1
      %p74 = scmp.eq.s32.totalorder %s17, 1
      %p75 = scmp.ne.s32.totalorder %s70, %s72
      %p76 = scmp.eq.s32.totalorder %s17, 0
      %p77 = por %p75, %p76
      %p78 = scmp.ne.s32.totalorder %s70, %s72
      %p79 = scmp.eq.s32.totalorder %s22, 1
      %p80 = por %p78, %p79
      %p81 = scmp.ne.s32.totalorder %s72, %s73
      %p82 = scmp.eq.s32.totalorder %s22, 0
      %p83 = por %p81, %p82
      %p84 = scmp.ne.s32.totalorder %s72, %s73
      %p85 = scmp.eq.s32.totalorder %s23, 1
      %p86 = por %p84, %p85
      %p88 = scmp.ne.s32.totalorder %s73, %s87
      %p89 = scmp.eq.s32.totalorder %s23, 0
      %p90 = por %p88, %p89
      %s91 = ssub.s32 %s26, %s35
      %p92 = scmp.eq.s32.totalorder %s91, 0
      %s94 = sadd.s32 %s93, 1
      %s95 = scalar_select %p92, %s93, %s94
      %p98 = pneg %p92
      %p99 = scmp.eq.s32.totalorder %s17, 1
      %p100 = por %p98, %p99
      %p101 = scmp.ne.s32.totalorder %s93, %s96
      %p102 = scmp.eq.s32.totalorder %s17, 0
      %p103 = por %p101, %p102
      %p104 = scmp.ne.s32.totalorder %s93, %s96
      %p105 = scmp.eq.s32.totalorder %s22, 1
      %p106 = por %p104, %p105
      %p107 = scmp.ne.s32.totalorder %s96, %s97
      %p108 = scmp.eq.s32.totalorder %s22, 0
      %p109 = por %p107, %p108
      %p110 = scmp.ne.s32.totalorder %s96, %s97
      %p111 = scmp.eq.s32.totalorder %s23, 1
      %p112 = por %p110, %p111
      %p114 = scmp.ne.s32.totalorder %s97, %s113
      %p115 = scmp.eq.s32.totalorder %s23, 0
      %p116 = por %p114, %p115
      %s117 = ssub.s32 %s26, %s35
      %p118 = scmp.eq.s32.totalorder %s117, 0
      %s120 = sadd.s32 %s119, 1
      %s121 = scalar_select %p118, %s119, %s120
      %p124 = pneg %p118
      %p125 = scmp.eq.s32.totalorder %s17, 1
      %p126 = por %p124, %p125
      %p127 = scmp.ne.s32.totalorder %s119, %s122
      %p128 = scmp.eq.s32.totalorder %s17, 0
      %p129 = por %p127, %p128
      %p130 = scmp.ne.s32.totalorder %s119, %s122
      %p131 = scmp.eq.s32.totalorder %s22, 1
      %p132 = por %p130, %p131
      %p133 = scmp.ne.s32.totalorder %s122, %s123
      %p134 = scmp.eq.s32.totalorder %s22, 0
      %p135 = por %p133, %p134
      %p136 = scmp.ne.s32.totalorder %s122, %s123
      %p137 = scmp.eq.s32.totalorder %s23, 1
      %p138 = por %p136, %p137
      %p140 = scmp.ne.s32.totalorder %s123, %s139
      %p141 = scmp.eq.s32.totalorder %s23, 0
      %p142 = por %p140, %p141
      %s143 = ssub.s32 %s26, %s35
      %s144 = ssub.s32 %s24, %s43
      %s145 = sor.u32 %s143, %s144
      %p146 = scmp.eq.s32.totalorder %s145, 0
      %s148 = sadd.s32 %s147, 1
      %s149 = scalar_select %p146, %s147, %s148
      %p152 = pneg %p146
      %p153 = scmp.eq.s32.totalorder %s17, 1
      %p154 = por %p152, %p153
      %p155 = scmp.ne.s32.totalorder %s147, %s150
      %p156 = scmp.eq.s32.totalorder %s17, 0
      %p157 = por %p155, %p156
      %p158 = scmp.ne.s32.totalorder %s147, %s150
      %p159 = scmp.eq.s32.totalorder %s22, 1
      %p160 = por %p158, %p159
      %p161 = scmp.ne.s32.totalorder %s150, %s151
      %p162 = scmp.eq.s32.totalorder %s22, 0
      %p163 = por %p161, %p162
      %p164 = scmp.ne.s32.totalorder %s150, %s151
      %p165 = scmp.eq.s32.totalorder %s23, 1
      %p166 = por %p164, %p165
      %p168 = scmp.ne.s32.totalorder %s151, %s167
      %p169 = scmp.eq.s32.totalorder %s23, 0
      %p170 = por %p168, %p169
      %s171 = ssub.s32 %s24, %s43
      %p172 = scmp.eq.s32.totalorder %s171, 0
      %s174 = sadd.s32 %s173, 1
      %s175 = scalar_select %p172, %s173, %s174
      %p178 = pneg %p172
      %p179 = scmp.eq.s32.totalorder %s17, 1
      %p180 = por %p178, %p179
      %p181 = scmp.ne.s32.totalorder %s173, %s176
      %p182 = scmp.eq.s32.totalorder %s17, 0
      %p183 = por %p181, %p182
      %p184 = scmp.ne.s32.totalorder %s173, %s176
      %p185 = scmp.eq.s32.totalorder %s22, 1
      %p186 = por %p184, %p185
      %p187 = scmp.ne.s32.totalorder %s176, %s177
      %p188 = scmp.eq.s32.totalorder %s22, 0
      %p189 = por %p187, %p188
      %p190 = scmp.ne.s32.totalorder %s176, %s177
      %p191 = scmp.eq.s32.totalorder %s23, 1
      %p192 = por %p190, %p191
      %p194 = scmp.ne.s32.totalorder %s177, %s193
      %p195 = scmp.eq.s32.totalorder %s23, 0
      %p196 = por %p194, %p195
      %s197 = ssub.s32 %s25, %s39
      %s198 = ssub.s32 %s24, %s43
      %s199 = sor.u32 %s197, %s198
      %p200 = scmp.eq.s32.totalorder %s199, 0
      %s202 = sadd.s32 %s201, 1
      %s203 = scalar_select %p200, %s201, %s202
      %p206 = pneg %p200
      %p207 = scmp.eq.s32.totalorder %s17, 1
      %p208 = por %p206, %p207
      %p209 = scmp.ne.s32.totalorder %s201, %s204
      %p210 = scmp.eq.s32.totalorder %s17, 0
      %p211 = por %p209, %p210
      %p212 = scmp.ne.s32.totalorder %s201, %s204
      %p213 = scmp.eq.s32.totalorder %s22, 1
      %p214 = por %p212, %p213
      %p215 = scmp.ne.s32.totalorder %s204, %s205
      %p216 = scmp.eq.s32.totalorder %s22, 0
      %p217 = por %p215, %p216
      %p218 = scmp.ne.s32.totalorder %s204, %s205
      %p219 = scmp.eq.s32.totalorder %s23, 1
      %p220 = por %p218, %p219
      %p222 = scmp.ne.s32.totalorder %s205, %s221
      %p223 = scmp.eq.s32.totalorder %s23, 0
      %p224 = por %p222, %p223
      %p225 = scmp.le.s32.totalorder 1, %s17
      %p226 = scmp.lt.s32.totalorder %s17, 3
      %p227 = pnand %p225, %p226
      %p228 = pneg %p227
      // Predicated region
      $region9: #{tpu_custom_call.1} parent=5 // pred_check
        _
      $region10: #{tpu_custom_call.1} parent=5 // pred_check_branch
        %230 = sbr.rel (%p227) target = $region12
      $region11: #{tpu_custom_call.1} parent=5 // pred_region
        %s231 = ssub.s32 %s17, 1
        // Predicated region
        $region13: #{tpu_custom_call.1} parent=11 // pred_check
          %p232 = pneg %p62
        $region14: #{tpu_custom_call.1} parent=11 // pred_check_branch
          %234 = sbr.rel (%p232) target = $region16
        $region15: #{tpu_custom_call.1} parent=11 // pred_region
          %s235 = smul.u32 2, %s28
          %s237 = ssub.s32 256, 256
          %238 = vsyncadd [#allocation4], %s237
          %s239 = smul.addr %s235, 2
          %s240 = smul.addr %s239, 64
          %s241 = scalar_lea.hbm %s0, %s240
          %s242 = sshll.u32 [#allocation3], 4
          %s243 = int_to_ptr.vmem [resolvable:$true] %s242
          %248 = dma.hbm_to_vmem [thread:$0]  %s241, 256, %s243, [#allocation4], 128, 128, 8
        $region16: #{tpu_custom_call.1} parent=11 // pred_fallthru
          _
        // Predicated region
        $region17: #{tpu_custom_call.1} parent=11 // pred_check
          %p249 = pneg %p83
        $region18: #{tpu_custom_call.1} parent=11 // pred_check_branch
          %251 = sbr.rel (%p249) target = $region20
        $region19: #{tpu_custom_call.1} parent=11 // pred_region
          _
        $region20: #{tpu_custom_call.1} parent=11 // pred_fallthru
          _
        // Predicated region
        $region21: #{tpu_custom_call.1} parent=11 // pred_check
          %p252 = pneg %p109
        $region22: #{tpu_custom_call.1} parent=11 // pred_check_branch
          %254 = sbr.rel (%p252) target = $region24
        $region23: #{tpu_custom_call.1} parent=11 // pred_region
          %s255 = smul.u32 4, %s29
          %s257 = ssub.s32 4096, 4096
          %258 = vsyncadd [#allocation7], %s257
          %s259 = smul.addr %s255, 128
          %s260 = scalar_lea.hbm %s2, %s259
          %s261 = sshll.u32 [#allocation6], 4
          %s262 = int_to_ptr.vmem [resolvable:$true] %s261
          %267 = dma.hbm_to_vmem [thread:$0]  %s260, 4096, %s262, [#allocation7], 512, 512, 32
        $region24: #{tpu_custom_call.1} parent=11 // pred_fallthru
          _
        // Predicated region
        $region25: #{tpu_custom_call.1} parent=11 // pred_check
          %p268 = pneg %p135
        $region26: #{tpu_custom_call.1} parent=11 // pred_check_branch
          %270 = sbr.rel (%p268) target = $region28
        $region27: #{tpu_custom_call.1} parent=11 // pred_region
          %s271 = smul.u32 4, %s29
          %p272 = scmp.lt.s32.totalorder %s271, 3
          %s273 = scalar_select %p272, %s271, 3
          %s274 = scalar_lea.vmem %s3, %s273
          %s275 = smul.u32 4, %s29
        $region28: #{tpu_custom_call.1} parent=11 // pred_fallthru
          _
      $region12: #{tpu_custom_call.1} parent=5 // pred_fallthru
        _
      %p276 = scmp.lt.s32.totalorder %s17, 2
      // Predicated region
      $region29: #{tpu_custom_call.1} parent=5 // pred_check
        %p277 = pneg %p276
      $region30: #{tpu_custom_call.1} parent=5 // pred_check_branch
        %279 = sbr.rel (%p277) target = $region32
      $region31: #{tpu_custom_call.1} parent=5 // pred_region
        // Predicated region
        $region33: #{tpu_custom_call.1} parent=31 // pred_check
          %p280 = pneg %p157
        $region34: #{tpu_custom_call.1} parent=31 // pred_check_branch
          %282 = sbr.rel (%p280) target = $region36
        $region35: #{tpu_custom_call.1} parent=31 // pred_region
          %s283 = sand.u32 %s17, 1
          %s284 = scalar_lea.sflag [#allocation4], %s283
          %s285 = sand.u32 %s147, 1
          %s286 = smul.addr %s285, 128
          %s287 = scalar_lea.vmem [#allocation8], %s286
          %s288 = smul.u32 16, %s26
          %s290 = ssub.s32 2048, 2048
          %291 = vsyncadd %s284, %s290
          %s292 = smul.addr %s288, 2
          %s293 = sadd.s32 %s24, %s292
          %s294 = smul.addr %s293, 128
          %s295 = scalar_lea.hbm %s4, %s294
          %s296 = sshll.u32 %s287, 4
          %s297 = int_to_ptr.vmem [resolvable:$true] %s296
          %302 = dma.hbm_to_vmem [thread:$0]  %s295, 2048, %s297, %s284, 256, 128, 8
        $region36: #{tpu_custom_call.1} parent=31 // pred_fallthru
          _
        // Predicated region
        $region37: #{tpu_custom_call.1} parent=31 // pred_check
          %p303 = pneg %p183
        $region38: #{tpu_custom_call.1} parent=31 // pred_check_branch
          %305 = sbr.rel (%p303) target = $region40
        $region39: #{tpu_custom_call.1} parent=31 // pred_region
          %p306 = scmp.lt.s32.totalorder %s24, 1
          %s307 = scalar_select %p306, %s24, 1
          %s308 = scalar_lea.vmem %s5, %s307
        $region40: #{tpu_custom_call.1} parent=31 // pred_fallthru
          _
      $region32: #{tpu_custom_call.1} parent=5 // pred_fallthru
        _
      %p309 = scmp.le.s32.totalorder 1, %s17
      %p310 = scmp.lt.s32.totalorder %s17, 3
      %p311 = pnand %p309, %p310
      %p312 = pneg %p311
      // Predicated region
      $region41: #{tpu_custom_call.1} parent=5 // pred_check
        _
      $region42: #{tpu_custom_call.1} parent=5 // pred_check_branch
        %314 = sbr.rel (%p311) target = $region44
      $region43: #{tpu_custom_call.1} parent=5 // pred_region
        %s315 = ssub.s32 %s17, 1
        // Predicated region
        $region45: #{tpu_custom_call.1} parent=43 // pred_check
          %p316 = pneg %p62
        $region46: #{tpu_custom_call.1} parent=43 // pred_check_branch
          %318 = sbr.rel (%p316) target = $region48
        $region47: #{tpu_custom_call.1} parent=43 // pred_region
          %319 = dma.done [#allocation4], 256
        $region48: #{tpu_custom_call.1} parent=43 // pred_fallthru
          _
        // Predicated region
        $region49: #{tpu_custom_call.1} parent=43 // pred_check
          %p320 = pneg %p109
        $region50: #{tpu_custom_call.1} parent=43 // pred_check_branch
          %322 = sbr.rel (%p320) target = $region52
        $region51: #{tpu_custom_call.1} parent=43 // pred_region
          %323 = dma.done [#allocation7], 4096
        $region52: #{tpu_custom_call.1} parent=43 // pred_fallthru
          _
        %s324 = sand.u32 %s22, 1
        %s325 = scalar_lea.sflag [#allocation4], %s324
        %s326 = sand.u32 %s150, 1
        %s327 = smul.addr %s326, 128
        %s328 = scalar_lea.vmem [#allocation8], %s327
        // Predicated region
        $region53: #{tpu_custom_call.1} parent=43 // pred_check
          %p329 = pneg %p163
        $region54: #{tpu_custom_call.1} parent=43 // pred_check_branch
          %331 = sbr.rel (%p329) target = $region56
        $region55: #{tpu_custom_call.1} parent=43 // pred_region
          %332 = dma.done %s325, 2048
        $region56: #{tpu_custom_call.1} parent=43 // pred_fallthru
          _
        %p333 = pneg %p62
        %p334 = pneg %p59
        %p335 = pneg %p83
        %p336 = pneg %p80
        %p337 = pneg %p109
        %p338 = pneg %p106
        %s339 = smul.u32 4, %s29
        %p340 = scmp.lt.s32.totalorder %s339, 3
        %s341 = scalar_select %p340, %s339, 3
        %s342 = scalar_lea.vmem %s3, %s341
        %p343 = pneg %p135
        %p344 = pneg %p132
        %s345 = sand.u32 %s22, 1
        %s346 = scalar_lea.sflag [#allocation4], %s345
        %s347 = sand.u32 %s150, 1
        %s348 = smul.addr %s347, 128
        %s349 = scalar_lea.vmem [#allocation8], %s348
        %p350 = pneg %p163
        %p351 = pneg %p160
        %p352 = scmp.lt.s32.totalorder %s27, 1
        %s353 = scalar_select %p352, %s27, 1
        %s354 = scalar_lea.vmem %s5, %s353
        %p355 = pneg %p189
        %p356 = pneg %p186
        %p357 = pneg %p217
        %p358 = pneg %p214
        %s359 = sand.u32 %s204, 1
        %s360 = scalar_lea.sflag [#allocation5], %s359
        %s361 = sand.u32 %s204, 1
        %s362 = smul.addr %s361, 8
        %s363 = scalar_lea.vmem [#allocation9], %s362
        %s364 = smul.u32 2, %s28
        %s365 = smul.u32 4, %s29
        %s366 = smul.u32 4, %s29
        %p367 = scmp.lt.s32.totalorder %s366, 3
        %s368 = scalar_select %p367, %s366, 3
        %s369 = scalar_lea.vmem %s3, %s368
        %s370 = smul.u32 4, %s29
        %s371 = smul.u32 16, %s29
        %p372 = scmp.lt.s32.totalorder %s27, 1
        %s373 = scalar_select %p372, %s27, 1
        %s374 = scalar_lea.vmem %s5, %s373
        %s375 = smul.u32 2, %s28
        %p377 = scmp.eq.s32.totalorder %s29, 0
        // Predicated region
        $region57: #{tpu_custom_call.1} parent=43 // pred_check
          %p378 = pneg %p377
        $region58: #{tpu_custom_call.1} parent=43 // pred_check_branch
          %380 = sbr.rel (%p378) target = $region60
        $region59: #{tpu_custom_call.1} parent=43 // pred_region
          %381 = vst [vmem:[#allocation2] sm:$0xff] 0.0
          %382 = vst [vmem:[#allocation2 + $0x8] sm:$0xff] 0.0
        $region60: #{tpu_custom_call.1} parent=43 // pred_fallthru
          _
        %v383 = vld [vmem:[#allocation3] sm:$0xff]
        %v384 = vld [vmem:[#allocation3 + $0x8] sm:$0xff]
        %v385 = vunpack.c.l.bf16 %v383
        %v386 = vunpack.c.h.bf16 %v383
        %v387 = vunpack.c.l.bf16 %v384
        %v388 = vunpack.c.h.bf16 %v384
        %v389 = vld [vmem:[%s1] sm:$0x3]
        %v391 = vlaneseq
        %v392 = vshrl.u32 %v391, 7
        %v393 = vsub.s32 0, %v392
        %v394 = vrot.slane %v389, %v393
        %v395 = vlaneseq
        %v396 = vshrl.u32 %v395, 7
        %v397 = vsub.s32 1, %v396
        %v398 = vrot.slane %v389, %v397
        %v401 = vmul.f32 %v385, %v394
        %v402 = vmul.f32 %v386, %v398
        %v403 = vmul.f32 %v387, %v394
        %v404 = vmul.f32 %v388, %v398
        %v405 = vpack.c.bf16 %v403, %v401
        %v406 = vpack.c.bf16 %v404, %v402
        %v407 = vld [vmem:[#allocation6] sm:$0xff]
        %v408 = vld [vmem:[#allocation6 + $0x8] sm:$0xff]
        %v409 = vld [vmem:[#allocation6 + $0x10] sm:$0xff]
        %v410 = vld [vmem:[#allocation6 + $0x18] sm:$0xff]
        %v411 = vld [vmem:[#allocation6 + $0x20] sm:$0xff]
        %v412 = vld [vmem:[#allocation6 + $0x28] sm:$0xff]
        %v413 = vld [vmem:[#allocation6 + $0x30] sm:$0xff]
        %v414 = vld [vmem:[#allocation6 + $0x38] sm:$0xff]
        %v415 = vld [vmem:[#allocation6 + $0x40] sm:$0xff]
        %v416 = vld [vmem:[#allocation6 + $0x48] sm:$0xff]
        %v417 = vld [vmem:[#allocation6 + $0x50] sm:$0xff]
        %v418 = vld [vmem:[#allocation6 + $0x58] sm:$0xff]
        %v419 = vld [vmem:[#allocation6 + $0x60] sm:$0xff]
        %v420 = vld [vmem:[#allocation6 + $0x68] sm:$0xff]
        %v421 = vld [vmem:[#allocation6 + $0x70] sm:$0xff]
        %v422 = vld [vmem:[#allocation6 + $0x78] sm:$0xff]
        %v423 = vld [vmem:[#allocation6 + $0x80] sm:$0xff]
        %v424 = vld [vmem:[#allocation6 + $0x88] sm:$0xff]
        %v425 = vld [vmem:[#allocation6 + $0x90] sm:$0xff]
        %v426 = vld [vmem:[#allocation6 + $0x98] sm:$0xff]
        %v427 = vld [vmem:[#allocation6 + $0xa0] sm:$0xff]
        %v428 = vld [vmem:[#allocation6 + $0xa8] sm:$0xff]
        %v429 = vld [vmem:[#allocation6 + $0xb0] sm:$0xff]
        %v430 = vld [vmem:[#allocation6 + $0xb8] sm:$0xff]
        %v431 = vld [vmem:[#allocation6 + $0xc0] sm:$0xff]
        %v432 = vld [vmem:[#allocation6 + $0xc8] sm:$0xff]
        %v433 = vld [vmem:[#allocation6 + $0xd0] sm:$0xff]
        %v434 = vld [vmem:[#allocation6 + $0xd8] sm:$0xff]
        %v435 = vld [vmem:[#allocation6 + $0xe0] sm:$0xff]
        %v436 = vld [vmem:[#allocation6 + $0xe8] sm:$0xff]
        %v437 = vld [vmem:[#allocation6 + $0xf0] sm:$0xff]
        %v438 = vld [vmem:[#allocation6 + $0xf8] sm:$0xff]
        %v439 = vunpack.c.l.s8.bf16 %v407
        %v440 = vunpack.c.l.s8.bf16 %v408
        %v441 = vunpack.c.l.s8.bf16 %v409
        %v442 = vunpack.c.l.s8.bf16 %v410
        %v443 = vunpack.c.h.s8.bf16 %v407
        %v444 = vunpack.c.h.s8.bf16 %v408
        %v445 = vunpack.c.h.s8.bf16 %v409
        %v446 = vunpack.c.h.s8.bf16 %v410
        %v447 = vunpack.c.l.s8.bf16 %v411
        %v448 = vunpack.c.l.s8.bf16 %v412
        %v449 = vunpack.c.l.s8.bf16 %v413
        %v450 = vunpack.c.l.s8.bf16 %v414
        %v451 = vunpack.c.h.s8.bf16 %v411
        %v452 = vunpack.c.h.s8.bf16 %v412
        %v453 = vunpack.c.h.s8.bf16 %v413
        %v454 = vunpack.c.h.s8.bf16 %v414
        %v455 = vunpack.c.l.s8.bf16 %v415
        %v456 = vunpack.c.l.s8.bf16 %v416
        %v457 = vunpack.c.l.s8.bf16 %v417
        %v458 = vunpack.c.l.s8.bf16 %v418
        %v459 = vunpack.c.h.s8.bf16 %v415
        %v460 = vunpack.c.h.s8.bf16 %v416
        %v461 = vunpack.c.h.s8.bf16 %v417
        %v462 = vunpack.c.h.s8.bf16 %v418
        %v463 = vunpack.c.l.s8.bf16 %v419
        %v464 = vunpack.c.l.s8.bf16 %v420
        %v465 = vunpack.c.l.s8.bf16 %v421
        %v466 = vunpack.c.l.s8.bf16 %v422
        %v467 = vunpack.c.h.s8.bf16 %v419
        %v468 = vunpack.c.h.s8.bf16 %v420
        %v469 = vunpack.c.h.s8.bf16 %v421
        %v470 = vunpack.c.h.s8.bf16 %v422
        %v471 = vunpack.c.l.s8.bf16 %v423
        %v472 = vunpack.c.l.s8.bf16 %v424
        %v473 = vunpack.c.l.s8.bf16 %v425
        %v474 = vunpack.c.l.s8.bf16 %v426
        %v475 = vunpack.c.h.s8.bf16 %v423
        %v476 = vunpack.c.h.s8.bf16 %v424
        %v477 = vunpack.c.h.s8.bf16 %v425
        %v478 = vunpack.c.h.s8.bf16 %v426
        %v479 = vunpack.c.l.s8.bf16 %v427
        %v480 = vunpack.c.l.s8.bf16 %v428
        %v481 = vunpack.c.l.s8.bf16 %v429
        %v482 = vunpack.c.l.s8.bf16 %v430
        %v483 = vunpack.c.h.s8.bf16 %v427
        %v484 = vunpack.c.h.s8.bf16 %v428
        %v485 = vunpack.c.h.s8.bf16 %v429
        %v486 = vunpack.c.h.s8.bf16 %v430
        %v487 = vunpack.c.l.s8.bf16 %v431
        %v488 = vunpack.c.l.s8.bf16 %v432
        %v489 = vunpack.c.l.s8.bf16 %v433
        %v490 = vunpack.c.l.s8.bf16 %v434
        %v491 = vunpack.c.h.s8.bf16 %v431
        %v492 = vunpack.c.h.s8.bf16 %v432
        %v493 = vunpack.c.h.s8.bf16 %v433
        %v494 = vunpack.c.h.s8.bf16 %v434
        %v495 = vunpack.c.l.s8.bf16 %v435
        %v496 = vunpack.c.l.s8.bf16 %v436
        %v497 = vunpack.c.l.s8.bf16 %v437
        %v498 = vunpack.c.l.s8.bf16 %v438
        %v499 = vunpack.c.h.s8.bf16 %v435
        %v500 = vunpack.c.h.s8.bf16 %v436
        %v501 = vunpack.c.h.s8.bf16 %v437
        %v502 = vunpack.c.h.s8.bf16 %v438
        %503 = vmatprep.subr.bf16.mxu0 %v440
        %504 = vmatpush1.bf16.msra.mxu0 %v439
        %505 = vmatprep.subr.bf16.mxu0 %v444
        %506 = vmatpush1.bf16.msra.mxu0 %v443
        %507 = vmatprep.subr.bf16.mxu0 %v448
        %508 = vmatpush1.bf16.msra.mxu0 %v447
        %509 = vmatprep.subr.bf16.mxu0 %v452
        %510 = vmatpush1.bf16.msra.mxu0 %v451
        %511 = vmatprep.subr.bf16.mxu0 %v456
        %512 = vmatpush1.bf16.msra.mxu0 %v455
        %513 = vmatprep.subr.bf16.mxu0 %v460
        %514 = vmatpush1.bf16.msra.mxu0 %v459
        %515 = vmatprep.subr.bf16.mxu0 %v464
        %516 = vmatpush1.bf16.msra.mxu0 %v463
        %517 = vmatprep.subr.bf16.mxu0 %v468
        %518 = vmatpush1.bf16.msra.mxu0 %v467
        %519 = vmatprep.subr.bf16.mxu0 %v472
        %520 = vmatpush1.bf16.msra.mxu0 %v471
        %521 = vmatprep.subr.bf16.mxu0 %v476
        %522 = vmatpush1.bf16.msra.mxu0 %v475
        %523 = vmatprep.subr.bf16.mxu0 %v480
        %524 = vmatpush1.bf16.msra.mxu0 %v479
        %525 = vmatprep.subr.bf16.mxu0 %v484
        %526 = vmatpush1.bf16.msra.mxu0 %v483
        %527 = vmatprep.subr.bf16.mxu0 %v488
        %528 = vmatpush1.bf16.msra.mxu0 %v487
        %529 = vmatprep.subr.bf16.mxu0 %v492
        %530 = vmatpush1.bf16.msra.mxu0 %v491
        %531 = vmatprep.subr.bf16.mxu0 %v496
        %532 = vmatpush1.bf16.msra.mxu0 %v495
        %533 = vmatprep.subr.bf16.mxu0 %v500
        %534 = vmatpush1.bf16.msra.mxu0 %v499
        %535 = vmatprep.mubr.bf16.mxu0 %v406
        %536 = vmatmul.mubr.bf16.gmra.mrb[0].mxu0 %v405
        %v537 = vpop.f32.mrb[0].mxu0
        %v538 = vadd.f32 0.0, %v537
        %v539 = vpop.f32.mrb[0].mxu0
        %v540 = vadd.f32 0.0, %v539
        %v541 = vpop.f32.mrb[0].mxu0
        %v542 = vadd.f32 0.0, %v541
        %v543 = vpop.f32.mrb[0].mxu0
        %v544 = vadd.f32 0.0, %v543
        %545 = vdwg.mxu0
        %546 = vmatprep.subr.bf16.mxu0 %v442
        %547 = vmatpush1.bf16.msra.mxu0 %v441
        %548 = vmatprep.subr.bf16.mxu0 %v446
        %549 = vmatpush1.bf16.msra.mxu0 %v445
        %550 = vmatprep.subr.bf16.mxu0 %v450
        %551 = vmatpush1.bf16.msra.mxu0 %v449
        %552 = vmatprep.subr.bf16.mxu0 %v454
        %553 = vmatpush1.bf16.msra.mxu0 %v453
        %554 = vmatprep.subr.bf16.mxu0 %v458
        %555 = vmatpush1.bf16.msra.mxu0 %v457
        %556 = vmatprep.subr.bf16.mxu0 %v462
        %557 = vmatpush1.bf16.msra.mxu0 %v461
        %558 = vmatprep.subr.bf16.mxu0 %v466
        %559 = vmatpush1.bf16.msra.mxu0 %v465
        %560 = vmatprep.subr.bf16.mxu0 %v470
        %561 = vmatpush1.bf16.msra.mxu0 %v469
        %562 = vmatprep.subr.bf16.mxu0 %v474
        %563 = vmatpush1.bf16.msra.mxu0 %v473
        %564 = vmatprep.subr.bf16.mxu0 %v478
        %565 = vmatpush1.bf16.msra.mxu0 %v477
        %566 = vmatprep.subr.bf16.mxu0 %v482
        %567 = vmatpush1.bf16.msra.mxu0 %v481
        %568 = vmatprep.subr.bf16.mxu0 %v486
        %569 = vmatpush1.bf16.msra.mxu0 %v485
        %570 = vmatprep.subr.bf16.mxu0 %v490
        %571 = vmatpush1.bf16.msra.mxu0 %v489
        %572 = vmatprep.subr.bf16.mxu0 %v494
        %573 = vmatpush1.bf16.msra.mxu0 %v493
        %574 = vmatprep.subr.bf16.mxu0 %v498
        %575 = vmatpush1.bf16.msra.mxu0 %v497
        %576 = vmatprep.subr.bf16.mxu0 %v502
        %577 = vmatpush1.bf16.msra.mxu0 %v501
        %578 = vmatprep.mubr.bf16.mxu0 %v406
        %579 = vmatmul.mubr.bf16.gmra.mrb[0].mxu0 %v405
        %v580 = vpop.f32.mrb[0].mxu0
        %v581 = vadd.f32 0.0, %v580
        %v582 = vpop.f32.mrb[0].mxu0
        %v583 = vadd.f32 0.0, %v582
        %v584 = vpop.f32.mrb[0].mxu0
        %v585 = vadd.f32 0.0, %v584
        %v586 = vpop.f32.mrb[0].mxu0
        %v587 = vadd.f32 0.0, %v586
        %588 = vdwg.mxu0
        %v589 = vld [vmem:[%s369] sm:$0xf]
        %v591 = vlaneseq
        %v592 = vshrl.u32 %v591, 7
        %v593 = vsub.s32 0, %v592
        %v594 = vrot.slane %v589, %v593
        %v595 = vlaneseq
        %v596 = vshrl.u32 %v595, 7
        %v597 = vsub.s32 1, %v596
        %v598 = vrot.slane %v589, %v597
        %v599 = vlaneseq
        %v600 = vshrl.u32 %v599, 7
        %v601 = vsub.s32 2, %v600
        %v602 = vrot.slane %v589, %v601
        %v603 = vlaneseq
        %v604 = vshrl.u32 %v603, 7
        %v605 = vsub.s32 3, %v604
        %v606 = vrot.slane %v589, %v605
        %v611 = vmul.f32 %v538, %v594
        %v612 = vmul.f32 %v540, %v598
        %v613 = vmul.f32 %v581, %v602
        %v614 = vmul.f32 %v583, %v606
        %v615 = vmul.f32 %v542, %v594
        %v616 = vmul.f32 %v544, %v598
        %v617 = vmul.f32 %v585, %v602
        %v618 = vmul.f32 %v587, %v606
        %v619 = vpack.c.bf16 %v615, %v611
        %v620 = vpack.c.bf16 %v616, %v612
        %v621 = vpack.c.bf16 %v617, %v613
        %v622 = vpack.c.bf16 %v618, %v614
        %v623 = vld [vmem:[%s328] sm:$0xff]
        %v624 = vld [vmem:[%s328 + $0x8] sm:$0xff]
        %v625 = vld [vmem:[%s328 + $0x10] sm:$0xff]
        %v626 = vld [vmem:[%s328 + $0x18] sm:$0xff]
        %v627 = vld [vmem:[%s328 + $0x20] sm:$0xff]
        %v628 = vld [vmem:[%s328 + $0x28] sm:$0xff]
        %v629 = vld [vmem:[%s328 + $0x30] sm:$0xff]
        %v630 = vld [vmem:[%s328 + $0x38] sm:$0xff]
        %v631 = vld [vmem:[%s328 + $0x40] sm:$0xff]
        %v632 = vld [vmem:[%s328 + $0x48] sm:$0xff]
        %v633 = vld [vmem:[%s328 + $0x50] sm:$0xff]
        %v634 = vld [vmem:[%s328 + $0x58] sm:$0xff]
        %v635 = vld [vmem:[%s328 + $0x60] sm:$0xff]
        %v636 = vld [vmem:[%s328 + $0x68] sm:$0xff]
        %v637 = vld [vmem:[%s328 + $0x70] sm:$0xff]
        %v638 = vld [vmem:[%s328 + $0x78] sm:$0xff]
        %v639 = vunpack.c.l.s8.bf16 %v623
        %v640 = vunpack.c.h.s8.bf16 %v623
        %v641 = vunpack.c.l.s8.bf16 %v624
        %v642 = vunpack.c.h.s8.bf16 %v624
        %v643 = vunpack.c.l.s8.bf16 %v625
        %v644 = vunpack.c.h.s8.bf16 %v625
        %v645 = vunpack.c.l.s8.bf16 %v626
        %v646 = vunpack.c.h.s8.bf16 %v626
        %v647 = vunpack.c.l.s8.bf16 %v627
        %v648 = vunpack.c.h.s8.bf16 %v627
        %v649 = vunpack.c.l.s8.bf16 %v628
        %v650 = vunpack.c.h.s8.bf16 %v628
        %v651 = vunpack.c.l.s8.bf16 %v629
        %v652 = vunpack.c.h.s8.bf16 %v629
        %v653 = vunpack.c.l.s8.bf16 %v630
        %v654 = vunpack.c.h.s8.bf16 %v630
        %v655 = vunpack.c.l.s8.bf16 %v631
        %v656 = vunpack.c.h.s8.bf16 %v631
        %v657 = vunpack.c.l.s8.bf16 %v632
        %v658 = vunpack.c.h.s8.bf16 %v632
        %v659 = vunpack.c.l.s8.bf16 %v633
        %v660 = vunpack.c.h.s8.bf16 %v633
        %v661 = vunpack.c.l.s8.bf16 %v634
        %v662 = vunpack.c.h.s8.bf16 %v634
        %v663 = vunpack.c.l.s8.bf16 %v635
        %v664 = vunpack.c.h.s8.bf16 %v635
        %v665 = vunpack.c.l.s8.bf16 %v636
        %v666 = vunpack.c.h.s8.bf16 %v636
        %v667 = vunpack.c.l.s8.bf16 %v637
        %v668 = vunpack.c.h.s8.bf16 %v637
        %v669 = vunpack.c.l.s8.bf16 %v638
        %v670 = vunpack.c.h.s8.bf16 %v638
        %v671 = vld [vmem:[#allocation2] sm:$0xff]
        %v672 = vld [vmem:[#allocation2 + $0x8] sm:$0xff]
        %673 = vmatprep.subr.bf16.mxu0 0
        %674 = vmatpush1.bf16.msra.mxu0 %v639
        %675 = vmatprep.subr.bf16.mxu0 0
        %676 = vmatpush1.bf16.msra.mxu0 %v640
        %677 = vmatprep.subr.bf16.mxu0 0
        %678 = vmatpush1.bf16.msra.mxu0 %v641
        %679 = vmatprep.subr.bf16.mxu0 0
        %680 = vmatpush1.bf16.msra.mxu0 %v642
        %681 = vmatprep.subr.bf16.mxu0 0
        %682 = vmatpush1.bf16.msra.mxu0 %v643
        %683 = vmatprep.subr.bf16.mxu0 0
        %684 = vmatpush1.bf16.msra.mxu0 %v644
        %685 = vmatprep.subr.bf16.mxu0 0
        %686 = vmatpush1.bf16.msra.mxu0 %v645
        %687 = vmatprep.subr.bf16.mxu0 0
        %688 = vmatpush1.bf16.msra.mxu0 %v646
        %689 = vmatprep.subr.bf16.mxu0 0
        %690 = vmatpush1.bf16.msra.mxu0 %v647
        %691 = vmatprep.subr.bf16.mxu0 0
        %692 = vmatpush1.bf16.msra.mxu0 %v648
        %693 = vmatprep.subr.bf16.mxu0 0
        %694 = vmatpush1.bf16.msra.mxu0 %v649
        %695 = vmatprep.subr.bf16.mxu0 0
        %696 = vmatpush1.bf16.msra.mxu0 %v650
        %697 = vmatprep.subr.bf16.mxu0 0
        %698 = vmatpush1.bf16.msra.mxu0 %v651
        %699 = vmatprep.subr.bf16.mxu0 0
        %700 = vmatpush1.bf16.msra.mxu0 %v652
        %701 = vmatprep.subr.bf16.mxu0 0
        %702 = vmatpush1.bf16.msra.mxu0 %v653
        %703 = vmatprep.subr.bf16.mxu0 0
        %704 = vmatpush1.bf16.msra.mxu0 %v654
        %705 = vmatprep.mubr.bf16.mxu0 %v620
        %706 = vmatmul.mubr.bf16.gmra.mrb[0].mxu0 %v619
        %v707 = vpop.f32.mrb[0].mxu0
        %v708 = vadd.f32 0.0, %v707
        %v709 = vpop.f32.mrb[0].mxu0
        %v710 = vpop.f32.mrb[0].mxu0
        %v711 = vadd.f32 0.0, %v710
        %v712 = vpop.f32.mrb[0].mxu0
        %713 = vdwg.mxu0
        %714 = vmatprep.subr.bf16.mxu0 0
        %715 = vmatpush1.bf16.msra.mxu0 %v655
        %716 = vmatprep.subr.bf16.mxu0 0
        %717 = vmatpush1.bf16.msra.mxu0 %v656
        %718 = vmatprep.subr.bf16.mxu0 0
        %719 = vmatpush1.bf16.msra.mxu0 %v657
        %720 = vmatprep.subr.bf16.mxu0 0
        %721 = vmatpush1.bf16.msra.mxu0 %v658
        %722 = vmatprep.subr.bf16.mxu0 0
        %723 = vmatpush1.bf16.msra.mxu0 %v659
        %724 = vmatprep.subr.bf16.mxu0 0
        %725 = vmatpush1.bf16.msra.mxu0 %v660
        %726 = vmatprep.subr.bf16.mxu0 0
        %727 = vmatpush1.bf16.msra.mxu0 %v661
        %728 = vmatprep.subr.bf16.mxu0 0
        %729 = vmatpush1.bf16.msra.mxu0 %v662
        %730 = vmatprep.subr.bf16.mxu0 0
        %731 = vmatpush1.bf16.msra.mxu0 %v663
        %732 = vmatprep.subr.bf16.mxu0 0
        %733 = vmatpush1.bf16.msra.mxu0 %v664
        %734 = vmatprep.subr.bf16.mxu0 0
        %735 = vmatpush1.bf16.msra.mxu0 %v665
        %736 = vmatprep.subr.bf16.mxu0 0
        %737 = vmatpush1.bf16.msra.mxu0 %v666
        %738 = vmatprep.subr.bf16.mxu0 0
        %739 = vmatpush1.bf16.msra.mxu0 %v667
        %740 = vmatprep.subr.bf16.mxu0 0
        %741 = vmatpush1.bf16.msra.mxu0 %v668
        %742 = vmatprep.subr.bf16.mxu0 0
        %743 = vmatpush1.bf16.msra.mxu0 %v669
        %744 = vmatprep.subr.bf16.mxu0 0
        %745 = vmatpush1.bf16.msra.mxu0 %v670
        %746 = vmatprep.mubr.bf16.mxu0 %v622
        %747 = vmatmul.mubr.bf16.gmra.mrb[0].mxu0 %v621
        %v748 = vpop.f32.mrb[0].mxu0
        %v749 = vadd.f32 %v708, %v748
        %v750 = vpop.f32.mrb[0].mxu0
        %v751 = vpop.f32.mrb[0].mxu0
        %v752 = vadd.f32 %v711, %v751
        %v753 = vpop.f32.mrb[0].mxu0
        %754 = vdwg.mxu0
        %v755 = vadd.f32 %v671, %v749
        %v756 = vadd.f32 %v672, %v752
        %757 = vst [vmem:[#allocation2] sm:$0xff] %v755
        %758 = vst [vmem:[#allocation2 + $0x8] sm:$0xff] %v756
        // Predicated region
        $region61: #{tpu_custom_call.1} parent=43 // pred_check
          %p759 = pneg %p377
        $region62: #{tpu_custom_call.1} parent=43 // pred_check_branch
          %761 = sbr.rel (%p759) target = $region64
        $region63: #{tpu_custom_call.1} parent=43 // pred_region
          %v762 = vld [vmem:[#allocation2] sm:$0xff]
          %v763 = vld [vmem:[#allocation2 + $0x8] sm:$0xff]
          %v764 = vld [vmem:[%s374] sm:$0x1]
          %v766 = vlaneseq
          %v767 = vshrl.u32 %v766, 7
          %v768 = vsub.s32 0, %v767
          %v769 = vrot.slane %v764, %v768
          %v771 = vmul.f32 %v762, %v769
          %v772 = vmul.f32 %v763, %v769
          %v773 = vpack.c.bf16 %v772, %v771
          %v775 = vunpack.c.l.b16 %v773
          %v776 = vunpack.c.h.b16 %v773
          %v777 = vpack.c.b16 %v775, %v775
          %v778 = vpack.c.b16 %v776, %v776
          %781 = vst [vmem:[%s363] sm:$0xf] %v777
          %782 = vst [vmem:[%s363 + $0x4] sm:$0xf] %v778
        $region64: #{tpu_custom_call.1} parent=43 // pred_fallthru
          _
        %s783 = sand.u32 %s204, 1
        %s784 = scalar_lea.sflag [#allocation5], %s783
        %s785 = sand.u32 %s204, 1
        %s786 = smul.addr %s785, 8
        %s787 = scalar_lea.vmem [#allocation9], %s786
        // Predicated region
        $region65: #{tpu_custom_call.1} parent=43 // pred_check
          %p788 = pneg %p214
        $region66: #{tpu_custom_call.1} parent=43 // pred_check_branch
          %790 = sbr.rel (%p788) target = $region68
        $region67: #{tpu_custom_call.1} parent=43 // pred_region
          %s791 = smul.u32 2, %s28
          %s793 = ssub.s32 128, 128
          %794 = vsyncadd %s784, %s793
          %s795 = smul.addr %s791, 2
          %s796 = sadd.s32 %s27, %s795
          %s797 = smul.addr %s796, 64
          %s798 = scalar_lea.hbm %s6, %s797
          %s799 = sshll.u32 %s787, 4
          %s800 = int_to_ptr.vmem [resolvable:$true] %s799
          %805 = dma.vmem_to_hbm [thread:$0]  %s800, 128, %s798, %s784, 64, 128, 4
        $region68: #{tpu_custom_call.1} parent=43 // pred_fallthru
          _
      $region44: #{tpu_custom_call.1} parent=5 // pred_fallthru
        _
      %p806 = scmp.le.s32.totalorder 2, %s17
      // Predicated region
      $region69: #{tpu_custom_call.1} parent=5 // pred_check
        %p807 = pneg %p806
      $region70: #{tpu_custom_call.1} parent=5 // pred_check_branch
        %809 = sbr.rel (%p807) target = $region72
      $region71: #{tpu_custom_call.1} parent=5 // pred_region
        %s810 = ssub.s32 %s17, 2
        // Predicated region
        $region73: #{tpu_custom_call.1} parent=71 // pred_check
          %p811 = pneg %p220
        $region74: #{tpu_custom_call.1} parent=71 // pred_check_branch
          %813 = sbr.rel (%p811) target = $region76
        $region75: #{tpu_custom_call.1} parent=71 // pred_region
          %s814 = sand.u32 %s205, 1
          %s815 = scalar_lea.sflag [#allocation5], %s814
          %s816 = sand.u32 %s205, 1
          %s817 = smul.addr %s816, 8
          %s818 = scalar_lea.vmem [#allocation9], %s817
          %819 = dma.done %s815, 128
        $region76: #{tpu_custom_call.1} parent=71 // pred_fallthru
          _
      $region72: #{tpu_custom_call.1} parent=5 // pred_fallthru
        _
    $region6: #{tpu_custom_call.1} parent=1 // loop_footer
      %s21 = sadd.s32 1, %s17
    $region7: #{tpu_custom_call.1} parent=1 // loop_footer_branch
      %16 = sbr.rel target = $region3
    $region8: #{tpu_custom_call.1} parent=1 // loop_exit
      _
    %820 = vsyncpa [#allocation4], 1
    %s821 = scalar_lea.sflag [#allocation4], 1
    %822 = vsyncpa %s821, 1
    %823 = vsyncpa [#allocation7], 1
    %824 = vsyncpa [#allocation5], 1
    %s825 = scalar_lea.sflag [#allocation5], 1
    %826 = vsyncpa %s825, 1

</llo_original>
